<compile_context>
chip_gen: v6e
topology: v6e:2x2x1
jax: 0.10.0
libtpu: 0.0.40
codegen_flags: <defaults>
</compile_context>

<pallas_src>
import functools

import jax
import jax.numpy as jnp
from jax.experimental import pallas as pl
from jax.experimental.pallas import tpu as pltpu


def _round_up(x, m):
    return ((x + m - 1) // m) * m


# ------------------- 1) squeeze 1x1 conv + ReLU, concat fused -------------------

def _squeeze_concat_kernel(x_ref, w_ref, b_ref, o_ref):
    acc = jnp.dot(x_ref[0], w_ref[...], preferred_element_type=jnp.float32)
    acc = jnp.maximum(acc + b_ref[...], 0.0)
    o_ref[...] = acc.astype(o_ref.dtype)


def squeeze_concat(x_stack, w, b):
    """x_stack: [n_in, M, Cin] -> relu(x @ w + b) written into [M, n_in*Cout].

    Grid is (n_in, M-tiles); the output index_map places input n's 256 output
    channels at column block n, i.e. torch.cat(..., dim=1) for free."""
    n_in, M, Cin = x_stack.shape
    Cout = w.shape[1]
    TM = min(512, _round_up(M, 8))
    M_pad = _round_up(M, TM)
    if M_pad != M:
        x_stack = jnp.pad(x_stack, ((0, 0), (0, M_pad - M), (0, 0)))
    out = pl.pallas_call(
        _squeeze_concat_kernel,
        out_shape=jax.ShapeDtypeStruct((M_pad, n_in * Cout), jnp.bfloat16),
        grid=(n_in, M_pad // TM),
        in_specs=[
            pl.BlockSpec((1, TM, Cin), lambda n, m: (n, m, 0)),
            pl.BlockSpec((Cin, Cout), lambda n, m: (0, 0)),
            pl.BlockSpec((1, Cout), lambda n, m: (0, 0)),
        ],
        out_specs=pl.BlockSpec((TM, Cout), lambda n, m: (m, n)),
        compiler_params=pltpu.CompilerParams(
            dimension_semantics=("parallel", "parallel")),
    )(x_stack.astype(jnp.bfloat16), w.astype(jnp.bfloat16),
      b.reshape(1, Cout).astype(jnp.float32))
    return out[:M]                                       # [M, n_in*Cout] bf16


# ------------------- 2) 3x3 conv + ReLU via in-kernel shifted taps --------------

def _conv3x3_kernel(x_ref, w_ref, b_ref, o_ref, *, H, Wp):
    # x_ref: (1, (H+3)*Wp, Cin) flattened padded input; w_ref: (9, Cin, Cout)
    n = H * Wp                                           # "wide" output pixel count

    def tap(t):
        dy, dx = divmod(t, 3)
        # output wide-pixel q=(r*Wp+c) reads padded-flat pixel q + dy*Wp + dx
        return x_ref[0, pl.ds(dy * Wp + dx, n), :]

    acc = jnp.dot(tap(0), w_ref[0], preferred_element_type=jnp.float32)
    for t in range(1, 9):
        acc = acc + jnp.dot(tap(t), w_ref[t], preferred_element_type=jnp.float32)
    acc = jnp.maximum(acc + b_ref[...], 0.0)
    o_ref[0] = acc.astype(o_ref.dtype)


def conv3x3_wide(x_nhwc, w_oihw, b):
    """3x3 conv, stride 1, pad 1, + ReLU.

    Input: NHWC.  Output: 'wide' flat layout (B, H*(W+2), Cout) where within each
    row of length W+2 only the first W entries are valid (last 2 are junk)."""
    B, H, W, Cin = x_nhwc.shape
    Cout = w_oihw.shape[0]
    Wp = W + 2
    # torch OIHW -> (kh, kw, Cin, Cout) -> (9, Cin, Cout); tap t = kh*3 + kw.
    w9 = jnp.transpose(w_oihw, (2, 3, 1, 0)).reshape(9, Cin, Cout).astype(jnp.bfloat16)
    # zero pad: 1 row top, 2 rows bottom (keeps all tap windows in range), 1 col L/R.
    xp = jnp.pad(x_nhwc.astype(jnp.bfloat16), ((0, 0), (1, 2), (1, 1), (0, 0)))
    xflat = xp.reshape(B, (H + 3) * Wp, Cin)
    return pl.pallas_call(
        functools.partial(_conv3x3_kernel, H=H, Wp=Wp),
        out_shape=jax.ShapeDtypeStruct((B, H * Wp, Cout), jnp.bfloat16),
        grid=(B,),
        in_specs=[
            pl.BlockSpec((1, (H + 3) * Wp, Cin), lambda i: (i, 0, 0)),
            pl.BlockSpec((9, Cin, Cout), lambda i: (0, 0, 0)),
            pl.BlockSpec((1, Cout), lambda i: (0, 0)),
        ],
        out_specs=pl.BlockSpec((1, H * Wp, Cout), lambda i: (i, 0, 0)),
        compiler_params=pltpu.CompilerParams(dimension_semantics=("parallel",)),
    )(xflat, w9, b.reshape(1, Cout).astype(jnp.float32))


def unwide(out_wide, B, H, W, C):
    """Drop the 2 junk columns of the wide layout -> (B, H, W, C)."""
    return out_wide.reshape(B, H, W + 2, C)[:, :, :W, :]


# ------------------- 3) fused pose_2 / a_conv / b_conv head ---------------------

def _head_kernel(x_ref, w_ref, b_ref, o_ref, *, W, Wp, inv_hw):
    x = x_ref[0]                                                       # (H*Wp, C) bf16
    y = jnp.dot(x, w_ref[...], preferred_element_type=jnp.float32) + b_ref[...]
    col = jax.lax.broadcasted_iota(jnp.int32, y.shape, 1)
    softplus = jnp.maximum(y, 0.0) + jnp.log1p(jnp.exp(-jnp.abs(y)))
    # cols [0,64): pose_2 (linear)   [64,96): a_conv softplus   [96,128): b_conv tanh
    act = jnp.where(col < 64, y, jnp.where(col < 96, softplus, jnp.tanh(y)))
    pix = jax.lax.broadcasted_iota(jnp.int32, (y.shape[0], 1), 0)
    act = jnp.where((pix % Wp) < W, act, 0.0)          # mask wide-layout junk columns
    o_ref[0] = jnp.sum(act, axis=0, keepdims=True) * inv_hw            # spatial mean


def pose_head(x_wide, H, W, wp, bp, wa, ba, wb, bb):
    """Fused 1x1 heads + activations + spatial mean on the wide-layout features."""
    B, HWp, C = x_wide.shape
    F6, F = wp.shape[1], wa.shape[1]
    assert F6 <= 64 and F <= 32, "head packing assumes 6*num_frames<=64, num_frames<=32"
    w128 = jnp.zeros((C, 128), jnp.float32)
    w128 = w128.at[:, :F6].set(wp).at[:, 64:64 + F].set(wa).at[:, 96:96 + F].set(wb)
    b128 = jnp.zeros((128,), jnp.float32)
    b128 = b128.at[:F6].set(bp).at[64:64 + F].set(ba).at[96:96 + F].set(bb)
    Wp = W + 2
    out = pl.pallas_call(
        functools.partial(_head_kernel, W=W, Wp=Wp, inv_hw=1.0 / (H * W)),
        out_shape=jax.ShapeDtypeStruct((B, 1, 128), jnp.float32),
        grid=(B,),
        in_specs=[
            pl.BlockSpec((1, HWp, C), lambda i: (i, 0, 0)),
            pl.BlockSpec((C, 128), lambda i: (0, 0)),
            pl.BlockSpec((1, 128), lambda i: (0, 0)),
        ],
        out_specs=pl.BlockSpec((1, 1, 128), lambda i: (i, 0, 0)),
        compiler_params=pltpu.CompilerParams(dimension_semantics=("parallel",)),
    )(x_wide, w128.astype(jnp.bfloat16), b128.reshape(1, 128))
    return out[:, 0, :]                                                # (B, 128)


# ----------------------------- parameters ---------------------------------

def init_params(key, num_ch_enc_last, num_input_features, num_frames):
    keys = jax.random.split(key, 12)
    C = 256

    def conv_w(k, cout, cin, kh, kw):
        fan_in = cin * kh * kw
        return jax.random.normal(k, (cout, cin, kh, kw), jnp.float32) / jnp.sqrt(fan_in)

    def conv_b(k, cout):
        return 0.01 * jax.random.normal(k, (cout,), jnp.float32)

    p = {}
    p["sq_w"] = conv_w(keys[0], C, num_ch_enc_last, 1, 1); p["sq_b"] = conv_b(keys[1], C)
    p["p0_w"] = conv_w(keys[2], C, num_input_features * C, 3, 3); p["p0_b"] = conv_b(keys[3], C)
    p["p1_w"] = conv_w(keys[4], C, C, 3, 3); p["p1_b"] = conv_b(keys[5], C)
    p["p2_w"] = conv_w(keys[6], 6 * num_frames, C, 1, 1); p["p2_b"] = conv_b(keys[7], 6 * num_frames)
    p["a_w"] = conv_w(keys[8], num_frames, C, 1, 1); p["a_b"] = conv_b(keys[9], num_frames)
    p["b_w"] = conv_w(keys[10], num_frames, C, 1, 1); p["b_b"] = conv_b(keys[11], num_frames)
    return p


def _w1x1_to_2d(w_oi11):
    # torch [Cout, Cin, 1, 1] -> [Cin, Cout]
    return jnp.transpose(w_oi11[:, :, 0, 0], (1, 0))


# ----------------------------- forward ------------------------------------

def pose_decoder_forward(input_features, params, num_frames):
    last = [f[-1] for f in input_features]             # each [B, Cenc, H, W] (NCHW)
    n_in = len(last)
    B, Cenc, H, W = last[0].shape
    C = 256

    # squeeze 1x1 conv + ReLU (shared conv applied to every input feature), with the
    # channel concat fused into the kernel's output layout.
    x_stack = jnp.stack(
        [jnp.transpose(f, (0, 2, 3, 1)).reshape(B * H * W, Cenc) for f in last], axis=0)
    cat = squeeze_concat(x_stack, _w1x1_to_2d(params["sq_w"]), params["sq_b"])
    cat = cat.reshape(B, H, W, n_in * C)

    out0_w = conv3x3_wide(cat, params["p0_w"], params["p0_b"])        # (B, H*(W+2), 256)
    out0 = unwide(out0_w, B, H, W, C)                                 # (B, H, W, 256)
    out1_w = conv3x3_wide(out0, params["p1_w"], params["p1_b"])       # (B, H*(W+2), 256)

    head = pose_head(out1_w, H, W,
                     _w1x1_to_2d(params["p2_w"]), params["p2_b"],
                     _w1x1_to_2d(params["a_w"]), params["a_b"],
                     _w1x1_to_2d(params["b_w"]), params["b_b"])       # (B, 128)

    out_pose = head[:, :6 * num_frames]                               # (B, 6F)
    a_mean = head[:, 64:64 + num_frames]                              # (B, F)
    b_mean = head[:, 96:96 + num_frames]                              # (B, F)

    axisangle = out_pose[..., :3]
    translation = out_pose[..., 3:]
    a = 0.01 * a_mean.reshape(-1, num_frames, 1, 1)
    b = 0.01 * b_mean.reshape(-1, num_frames, 1, 1)
    return axisangle, translation, a, b


# ----------------------------- pure-JAX reference --------------------------

def ref_forward(last_feats, params, num_frames):
    def conv2d(x, w, b, padding):
        y = jax.lax.conv_general_dilated(
            x, w, window_strides=(1, 1), padding=padding,
            dimension_numbers=("NCHW", "OIHW", "NCHW"))
        return y + b[None, :, None, None]

    cat = jnp.concatenate(
        [jax.nn.relu(conv2d(f, params["sq_w"], params["sq_b"], "VALID")) for f in last_feats],
        axis=1)
    out = jax.nn.relu(conv2d(cat, params["p0_w"], params["p0_b"], "SAME"))
    out_ab = jax.nn.relu(conv2d(out, params["p1_w"], params["p1_b"], "SAME"))
    out = conv2d(out_ab, params["p2_w"], params["p2_b"], "VALID")
    out_pose = out.mean(axis=3).mean(axis=2)
    a = jax.nn.softplus(conv2d(out_ab, params["a_w"], params["a_b"], "VALID")).mean(axis=3).mean(axis=2)
    b = jnp.tanh(conv2d(out_ab, params["b_w"], params["b_b"], "VALID")).mean(axis=3).mean(axis=2)
    axisangle = out_pose[..., :3]
    translation = out_pose[..., 3:]
    a = 0.01 * a.reshape(-1, num_frames, 1, 1)
    b = 0.01 * b.reshape(-1, num_frames, 1, 1)
    return axisangle, translation, a, b


# ----------------------------- main ----------------------------------------

if __name__ == "__main__":
    B, Cenc, H, W = 2, 16, 8, 8
    num_input_features = 2
    num_frames = num_input_features - 1          # matches module default

    key = jax.random.PRNGKey(0)
    k_feat, k_param = jax.random.split(key)
    fkeys = jax.random.split(k_feat, num_input_features)

    # mimic the module's input: list (per frame) of lists of encoder features;
    # only the last feature of each list is used by the decoder.
    input_features = [[jax.random.normal(fkeys[i], (B, Cenc, H, W), jnp.float32)]
                      for i in range(num_input_features)]

    params = init_params(k_param, Cenc, num_input_features, num_frames)

    outs = pose_decoder_forward(input_features, params, num_frames)
    outs = jax.block_until_ready(outs)

    refs = ref_forward([f[-1] for f in input_features], params, num_frames)
    names = ["axisangle", "translation", "a", "b"]
    for name, o, r in zip(names, outs, refs):
        assert o.shape == r.shape, (name, o.shape, r.shape)
        assert bool(jnp.allclose(o, r, rtol=5e-2, atol=5e-2)), \
            (name, float(jnp.max(jnp.abs(o - r))))

    print("KERNEL_OK")
</pallas_src>

<mosaic_0001>
module attributes {stable_mosaic.version = 11 : i64} {
  func.func @_squeeze_concat_kernel(%arg0: i32, %arg1: i32, %arg2: memref<1x128x16xbf16, #tpu.memory_space<vmem>>, %arg3: memref<16x256xbf16, #tpu.memory_space<vmem>>, %arg4: memref<1x256xf32, #tpu.memory_space<vmem>>, %arg5: memref<128x256xbf16, #tpu.memory_space<vmem>>) attributes {dimension_semantics = [#tpu.dimension_semantics<parallel>, #tpu.dimension_semantics<parallel>], iteration_bounds = array<i64: 2, 1>, scalar_prefetch = 0 : i64, scratch_operands = 0 : i64, tpu.core_type = #tpu.core_type<tc>, window_params = [{transform_indices = @transform_0, window_bounds = array<i64: 1, 128, 16>}, {pipeline_mode = #tpu.pipeline_mode<synchronous>, transform_indices = @transform_1, window_bounds = array<i64: 16, 256>}, {pipeline_mode = #tpu.pipeline_mode<synchronous>, transform_indices = @transform_2, window_bounds = array<i64: 1, 256>}, {transform_indices = @transform_3, window_bounds = array<i64: 128, 256>}]} {
    %c0 = arith.constant 0 : index
    %c0_0 = arith.constant 0 : index
    %c0_1 = arith.constant 0 : index
    %0 = vector.load %arg2[%c0, %c0_0, %c0_1] : memref<1x128x16xbf16, #tpu.memory_space<vmem>>, vector<1x128x16xbf16>
    %1 = vector.shape_cast %0 : vector<1x128x16xbf16> to vector<128x16xbf16>
    %c0_2 = arith.constant 0 : index
    %c0_3 = arith.constant 0 : index
    %2 = vector.load %arg3[%c0_2, %c0_3] : memref<16x256xbf16, #tpu.memory_space<vmem>>, vector<16x256xbf16>
    %cst = arith.constant dense<0.000000e+00> : vector<128x256xf32>
    %3 = tpu.matmul %1, %2, %cst {dimension_numbers = #tpu.dot_dimension_numbers<[1], [0], [0], [1], [0, 0, 1, 1], [], []>} : vector<128x16xbf16>, vector<16x256xbf16>, vector<128x256xf32> -> vector<128x256xf32>
    %c0_4 = arith.constant 0 : index
    %c0_5 = arith.constant 0 : index
    %4 = vector.load %arg4[%c0_4, %c0_5] : memref<1x256xf32, #tpu.memory_space<vmem>>, vector<1x256xf32>
    %5 = vector.broadcast %4 : vector<1x256xf32> to vector<128x256xf32>
    %6 = arith.addf %3, %5 : vector<128x256xf32>
    %cst_6 = arith.constant 0.000000e+00 : f32
    %7 = vector.broadcast %cst_6 : f32 to vector<128x256xf32>
    %8 = arith.maximumf %6, %7 : vector<128x256xf32>
    %9 = arith.truncf %8 : vector<128x256xf32> to vector<128x256xbf16>
    %c0_7 = arith.constant 0 : index
    %c0_8 = arith.constant 0 : index
    %10 = vector.load %arg5[%c0_7, %c0_8] : memref<128x256xbf16, #tpu.memory_space<vmem>>, vector<128x256xbf16>
    tpu.vector_store %arg5[%c0_7, %c0_8], %9 {strides = array<i32>} : memref<128x256xbf16, #tpu.memory_space<vmem>>, vector<128x256xbf16>,
    return
  }
  func.func @transform_0(%arg0: i32, %arg1: i32) -> (i32, i32, i32) {
    %c0_i32 = arith.constant 0 : i32
    %c0_i32_0 = arith.constant 0 : i32
    return %arg0, %arg1, %c0_i32 : i32, i32, i32
  }
  func.func @transform_1(%arg0: i32, %arg1: i32) -> (i32, i32) {
    %c0_i32 = arith.constant 0 : i32
    %c0_i32_0 = arith.constant 0 : i32
    %c0_i32_1 = arith.constant 0 : i32
    return %c0_i32, %c0_i32_0 : i32, i32
  }
  func.func @transform_2(%arg0: i32, %arg1: i32) -> (i32, i32) {
    %c0_i32 = arith.constant 0 : i32
    %c0_i32_0 = arith.constant 0 : i32
    %c0_i32_1 = arith.constant 0 : i32
    return %c0_i32, %c0_i32_0 : i32, i32
  }
  func.func @transform_3(%arg0: i32, %arg1: i32) -> (i32, i32) {
    %c0_i32 = arith.constant 0 : i32
    return %arg1, %arg0 : i32, i32
  }
}

</mosaic_0001>

<llo_original>
// kernel: tpu_custom_call.1
$region0: #{tpu_custom_call.1}
  #allocation0 [shape = 'u32[]', space=smem, size = 0x4, offset = 0x4, fixed_abs, tag = 'smem constant byte address 0x4 - core index']
  #allocation1 [shape = 'u32[144,128]{1,0:T(1,128)}', space=vmem, size = 0x12000, scoped, tag = 'internal scratch']
  %s0 = inlined_call_operand.vmem [shape: bf16[2,128,16], index: 0, kind: input, shape index: {}]
  %s1 = inlined_call_operand.vmem [shape: bf16[16,256], index: 1, kind: input, shape index: {}]
  %s2 = inlined_call_operand.vmem [shape: f32[1,256], index: 2, kind: input, shape index: {}]
  %s3 = inlined_call_operand.hbm [shape: bf16[128,512], index: 3, kind: output, shape index: {}]
  %s4 = sld [smem:[#allocation0]]
  $region45: #{tpu_custom_call.1} parent=0
    _
  %s6 = ssub.s32 1, %s4
  %s7 = scalar_select 0, %s6, %s4
  $region1: #{tpu_custom_call.1} parent=0
    #allocation2 [shape = 'u8[131072]{0}', space=vmem, size = 0x20000, scoped, tag = 'output window, operand 0']
    #allocation3 [shape = 's32[2]{0}', space=sflag, size = 0x8, scoped, tag = 'scoped memory for tpu_custom_call.1']
    %8 = vsyncpa [#allocation3], 0
    %s9 = scalar_lea.sflag [#allocation3], 1
    %10 = vsyncpa %s9, 0
    loop: start=0, step=1, limit=4
    $region2: #{tpu_custom_call.1} parent=1 // loop_pre_header
      _
    $region3: #{tpu_custom_call.1} parent=1 // loop_header
      %s12 = sphi 0, %s16
      %p13 = scmp.ge.s32.totalorder %s12, 4
      %s19 = sphi 0, %s31
      %s20 = sphi 0, %s27
      %s21 = sphi 0, %s19
      %s22 = sphi 0, %s20
      %s23 = sphi 0, %s21
      %s24 = sphi 0, %s22
      %s36 = sphi 0, %s38
      %s39 = sphi 0, %s36
      %s40 = sphi 0, %s39
      %s56 = sphi 0, %s40
      %s60 = sphi 0, %s60
      %s62 = sphi 0, %s60
      %s63 = sphi 0, %s62
      %s77 = sphi 0, %s63
      %s81 = sphi 0, %s81
      %s83 = sphi 0, %s81
      %s84 = sphi 0, %s83
      %s98 = sphi 0, %s84
      %s106 = sphi 0, %s108
      %s109 = sphi 0, %s106
      %s110 = sphi 0, %s109
      %s126 = sphi 0, %s110
    $region4: #{tpu_custom_call.1} parent=1 // loop_header_branch
      %15 = sbr.rel (%p13) target = $region8
    $region5: #{tpu_custom_call.1} parent=1 // loop_body
      %s17 = ssub.s32 %s12, 1
      %s18 = ssub.s32 %s12, 2
      %s25 = sadd.s32 1, %s20
      %p26 = scmp.ge.s32.totalorder %s25, 1
      %s27 = scalar_select %p26, 0, %s25
      %s28 = sadd.s32 1, %s19
      %s29 = scalar_select %p26, %s28, %s19
      %p30 = scmp.ge.s32.totalorder %s29, 2
      %s31 = scalar_select %p30, 0, %s29
      %s32 = ssub.s32 %s19, %s31
      %s33 = ssub.s32 %s20, %s27
      %s34 = sor.u32 %s32, %s33
      %p35 = scmp.eq.s32.totalorder %s34, 0
      %s37 = sadd.s32 %s36, 1
      %s38 = scalar_select %p35, %s36, %s37
      %p41 = pneg %p35
      %p42 = scmp.eq.s32.totalorder %s12, 1
      %p43 = por %p41, %p42
      %p44 = scmp.ne.s32.totalorder %s36, %s39
      %p45 = scmp.eq.s32.totalorder %s12, 0
      %p46 = por %p44, %p45
      %p47 = scmp.ne.s32.totalorder %s36, %s39
      %p48 = scmp.eq.s32.totalorder %s17, 1
      %p49 = por %p47, %p48
      %p50 = scmp.ne.s32.totalorder %s39, %s40
      %p51 = scmp.eq.s32.totalorder %s17, 0
      %p52 = por %p50, %p51
      %p53 = scmp.ne.s32.totalorder %s39, %s40
      %p54 = scmp.eq.s32.totalorder %s18, 1
      %p55 = por %p53, %p54
      %p57 = scmp.ne.s32.totalorder %s40, %s56
      %p58 = scmp.eq.s32.totalorder %s18, 0
      %p59 = por %p57, %p58
      %s61 = sadd.s32 %s60, 1
      %p64 = scmp.eq.s32.totalorder %s12, 1
      %p65 = scmp.ne.s32.totalorder %s60, %s62
      %p66 = scmp.eq.s32.totalorder %s12, 0
      %p67 = por %p65, %p66
      %p68 = scmp.ne.s32.totalorder %s60, %s62
      %p69 = scmp.eq.s32.totalorder %s17, 1
      %p70 = por %p68, %p69
      %p71 = scmp.ne.s32.totalorder %s62, %s63
      %p72 = scmp.eq.s32.totalorder %s17, 0
      %p73 = por %p71, %p72
      %p74 = scmp.ne.s32.totalorder %s62, %s63
      %p75 = scmp.eq.s32.totalorder %s18, 1
      %p76 = por %p74, %p75
      %p78 = scmp.ne.s32.totalorder %s63, %s77
      %p79 = scmp.eq.s32.totalorder %s18, 0
      %p80 = por %p78, %p79
      %s82 = sadd.s32 %s81, 1
      %p85 = scmp.eq.s32.totalorder %s12, 1
      %p86 = scmp.ne.s32.totalorder %s81, %s83
      %p87 = scmp.eq.s32.totalorder %s12, 0
      %p88 = por %p86, %p87
      %p89 = scmp.ne.s32.totalorder %s81, %s83
      %p90 = scmp.eq.s32.totalorder %s17, 1
      %p91 = por %p89, %p90
      %p92 = scmp.ne.s32.totalorder %s83, %s84
      %p93 = scmp.eq.s32.totalorder %s17, 0
      %p94 = por %p92, %p93
      %p95 = scmp.ne.s32.totalorder %s83, %s84
      %p96 = scmp.eq.s32.totalorder %s18, 1
      %p97 = por %p95, %p96
      %p99 = scmp.ne.s32.totalorder %s84, %s98
      %p100 = scmp.eq.s32.totalorder %s18, 0
      %p101 = por %p99, %p100
      %s102 = ssub.s32 %s20, %s27
      %s103 = ssub.s32 %s19, %s31
      %s104 = sor.u32 %s102, %s103
      %p105 = scmp.eq.s32.totalorder %s104, 0
      %s107 = sadd.s32 %s106, 1
      %s108 = scalar_select %p105, %s106, %s107
      %p111 = pneg %p105
      %p112 = scmp.eq.s32.totalorder %s12, 1
      %p113 = por %p111, %p112
      %p114 = scmp.ne.s32.totalorder %s106, %s109
      %p115 = scmp.eq.s32.totalorder %s12, 0
      %p116 = por %p114, %p115
      %p117 = scmp.ne.s32.totalorder %s106, %s109
      %p118 = scmp.eq.s32.totalorder %s17, 1
      %p119 = por %p117, %p118
      %p120 = scmp.ne.s32.totalorder %s109, %s110
      %p121 = scmp.eq.s32.totalorder %s17, 0
      %p122 = por %p120, %p121
      %p123 = scmp.ne.s32.totalorder %s109, %s110
      %p124 = scmp.eq.s32.totalorder %s18, 1
      %p125 = por %p123, %p124
      %p127 = scmp.ne.s32.totalorder %s110, %s126
      %p128 = scmp.eq.s32.totalorder %s18, 0
      %p129 = por %p127, %p128
      %p130 = scmp.le.s32.totalorder 1, %s12
      %p131 = scmp.lt.s32.totalorder %s12, 3
      %p132 = pnand %p130, %p131
      %p133 = pneg %p132
      // Predicated region
      $region9: #{tpu_custom_call.1} parent=5 // pred_check
        _
      $region10: #{tpu_custom_call.1} parent=5 // pred_check_branch
        %135 = sbr.rel (%p132) target = $region12
      $region11: #{tpu_custom_call.1} parent=5 // pred_region
        %s136 = ssub.s32 %s12, 1
        // Predicated region
        $region13: #{tpu_custom_call.1} parent=11 // pred_check
          %p137 = pneg %p73
        $region14: #{tpu_custom_call.1} parent=11 // pred_check_branch
          %139 = sbr.rel (%p137) target = $region16
        $region15: #{tpu_custom_call.1} parent=11 // pred_region
          _
        $region16: #{tpu_custom_call.1} parent=11 // pred_fallthru
          _
        // Predicated region
        $region17: #{tpu_custom_call.1} parent=11 // pred_check
          %p140 = pneg %p94
        $region18: #{tpu_custom_call.1} parent=11 // pred_check_branch
          %142 = sbr.rel (%p140) target = $region20
        $region19: #{tpu_custom_call.1} parent=11 // pred_region
          _
        $region20: #{tpu_custom_call.1} parent=11 // pred_fallthru
          _
      $region12: #{tpu_custom_call.1} parent=5 // pred_fallthru
        _
      %p143 = scmp.lt.s32.totalorder %s12, 2
      // Predicated region
      $region21: #{tpu_custom_call.1} parent=5 // pred_check
        %p144 = pneg %p143
      $region22: #{tpu_custom_call.1} parent=5 // pred_check_branch
        %146 = sbr.rel (%p144) target = $region24
      $region23: #{tpu_custom_call.1} parent=5 // pred_region
        // Predicated region
        $region25: #{tpu_custom_call.1} parent=23 // pred_check
          %p147 = pneg %p46
        $region26: #{tpu_custom_call.1} parent=23 // pred_check_branch
          %149 = sbr.rel (%p147) target = $region28
        $region27: #{tpu_custom_call.1} parent=23 // pred_region
          %s150 = smul.u32 16, %s20
          %p151 = scmp.lt.s32.totalorder %s19, 1
          %s152 = scalar_select %p151, %s19, 1
          %p153 = scmp.lt.s32.totalorder %s150, 15
          %s154 = scalar_select %p153, %s150, 15
          %s155 = smul.addr %s152, 16
          %s156 = sadd.s32 %s154, %s155
          %s157 = smul.addr %s156, 4
          %s158 = scalar_lea.vmem %s0, %s157
          %s159 = smul.u32 16, %s20
        $region28: #{tpu_custom_call.1} parent=23 // pred_fallthru
          _
      $region24: #{tpu_custom_call.1} parent=5 // pred_fallthru
        _
      %p160 = scmp.le.s32.totalorder 1, %s12
      %p161 = scmp.lt.s32.totalorder %s12, 3
      %p162 = pnand %p160, %p161
      %p163 = pneg %p162
      // Predicated region
      $region29: #{tpu_custom_call.1} parent=5 // pred_check
        _
      $region30: #{tpu_custom_call.1} parent=5 // pred_check_branch
        %165 = sbr.rel (%p162) target = $region32
      $region31: #{tpu_custom_call.1} parent=5 // pred_region
        %s166 = ssub.s32 %s12, 1
        %s167 = smul.u32 16, %s22
        %p168 = scmp.lt.s32.totalorder %s21, 1
        %s169 = scalar_select %p168, %s21, 1
        %p170 = scmp.lt.s32.totalorder %s167, 15
        %s171 = scalar_select %p170, %s167, 15
        %s172 = smul.addr %s169, 16
        %s173 = sadd.s32 %s171, %s172
        %s174 = smul.addr %s173, 4
        %s175 = scalar_lea.vmem %s0, %s174
        %p176 = pneg %p52
        %p177 = pneg %p49
        %p178 = pneg %p73
        %p179 = pneg %p70
        %p180 = pneg %p94
        %p181 = pneg %p91
        %p182 = pneg %p122
        %p183 = pneg %p119
        %s184 = sand.u32 %s109, 1
        %s185 = scalar_lea.sflag [#allocation3], %s184
        %s186 = sand.u32 %s109, 1
        %s187 = smul.addr %s186, 128
        %s188 = scalar_lea.vmem [#allocation2], %s187
        %s189 = smul.u32 16, %s22
        %p190 = scmp.lt.s32.totalorder %s21, 1
        %s191 = scalar_select %p190, %s21, 1
        %p192 = scmp.lt.s32.totalorder %s189, 15
        %s193 = scalar_select %p192, %s189, 15
        %s194 = smul.addr %s191, 16
        %s195 = sadd.s32 %s193, %s194
        %s196 = smul.addr %s195, 4
        %s197 = scalar_lea.vmem %s0, %s196
        %s198 = smul.u32 16, %s22
        %s199 = smul.u32 16, %s22
        %s200 = smul.u32 2, %s21
        %v202 = vld [vmem:[%s197] sm:$0xf]
        %v203 = vld [vmem:[%s197 + $0x4] sm:$0xf]
        %v204 = vld [vmem:[%s197 + $0x8] sm:$0xf]
        %v205 = vld [vmem:[%s197 + $0xc] sm:$0xf]
        %v206 = vld [vmem:[%s197 + $0x10] sm:$0xf]
        %v207 = vld [vmem:[%s197 + $0x14] sm:$0xf]
        %v208 = vld [vmem:[%s197 + $0x18] sm:$0xf]
        %v209 = vld [vmem:[%s197 + $0x1c] sm:$0xf]
        %v210 = vld [vmem:[%s197 + $0x20] sm:$0xf]
        %v211 = vld [vmem:[%s197 + $0x24] sm:$0xf]
        %v212 = vld [vmem:[%s197 + $0x28] sm:$0xf]
        %v213 = vld [vmem:[%s197 + $0x2c] sm:$0xf]
        %v214 = vld [vmem:[%s197 + $0x30] sm:$0xf]
        %v215 = vld [vmem:[%s197 + $0x34] sm:$0xf]
        %v216 = vld [vmem:[%s197 + $0x38] sm:$0xf]
        %v217 = vld [vmem:[%s197 + $0x3c] sm:$0xf]
        %v218 = vld [vmem:[%s1] sm:$0xff]
        %v219 = vld [vmem:[%s1 + $0x8] sm:$0xff]
        %v220 = vld [vmem:[%s2] sm:$0x3]
        %v222 = vlaneseq
        %v223 = vshrl.u32 %v222, 7
        %v224 = vsub.s32 0, %v223
        %v225 = vrot.slane %v220, %v224
        %v226 = vlaneseq
        %v227 = vshrl.u32 %v226, 7
        %v228 = vsub.s32 1, %v227
        %v229 = vrot.slane %v220, %v228
        %v248 = vunpack.c.l.b16 %v202
        %v249 = vunpack.c.l.b16 %v203
        %v250 = vunpack.c.l.b16 %v204
        %v251 = vunpack.c.l.b16 %v205
        %v252 = vunpack.c.l.b16 %v206
        %v253 = vunpack.c.l.b16 %v207
        %v254 = vunpack.c.l.b16 %v208
        %v255 = vunpack.c.l.b16 %v209
        %v256 = vunpack.c.l.b16 %v210
        %v257 = vunpack.c.l.b16 %v211
        %v258 = vunpack.c.l.b16 %v212
        %v259 = vunpack.c.l.b16 %v213
        %v260 = vunpack.c.l.b16 %v214
        %v261 = vunpack.c.l.b16 %v215
        %v262 = vunpack.c.l.b16 %v216
        %v263 = vunpack.c.l.b16 %v217
        %v264 = vpack.c.b16 %v249, %v248
        %v265 = vpack.c.b16 %v251, %v250
        %v266 = vpack.c.b16 %v253, %v252
        %v267 = vpack.c.b16 %v255, %v254
        %v268 = vpack.c.b16 %v257, %v256
        %v269 = vpack.c.b16 %v259, %v258
        %v270 = vpack.c.b16 %v261, %v260
        %v271 = vpack.c.b16 %v263, %v262
        %v274 = vunpack.c.l.b16 %v218
        %v275 = vunpack.c.h.b16 %v218
        %v276 = vunpack.c.l.b16 %v219
        %v277 = vunpack.c.h.b16 %v219
        %v278 = vpack.c.b16 %v276, %v274
        %v279 = vpack.c.b16 %v277, %v275
        %vm282 = vcmask 130048
        %v284 = vsel %vm282, %v264, 0
        %v287 = vsel %vm282, %v265, 0
        %v290 = vsel %vm282, %v266, 0
        %v293 = vsel %vm282, %v267, 0
        %v296 = vsel %vm282, %v268, 0
        %v299 = vsel %vm282, %v269, 0
        %v302 = vsel %vm282, %v270, 0
        %v305 = vsel %vm282, %v271, 0
        %307 = vmatprep.subr.bf16.mxu0 0
        %308 = vmatpush1.bf16.msra.mxu0 0
        %309 = vmatprep.subr.bf16.mxu0 0
        %310 = vmatpush1.bf16.msra.mxu0 0
        %311 = vmatprep.subr.bf16.mxu0 0
        %312 = vmatpush1.bf16.msra.mxu0 0
        %313 = vmatprep.subr.bf16.mxu0 0
        %314 = vmatpush1.bf16.msra.mxu0 0
        %315 = vmatprep.subr.bf16.mxu0 0
        %316 = vmatpush1.bf16.msra.mxu0 0
        %317 = vmatprep.subr.bf16.mxu0 0
        %318 = vmatpush1.bf16.msra.mxu0 0
        %319 = vmatprep.subr.bf16.mxu0 0
        %320 = vmatpush1.bf16.msra.mxu0 0
        %321 = vmatprep.subr.bf16.mxu0 %v279
        %322 = vmatpush1.bf16.msra.mxu0 %v278
        %323 = vmatprep.subr.bf16.mxu0 0
        %324 = vmatpush2.bf16.msra.mxu0 0
        %325 = vmatprep.subr.bf16.mxu0 0
        %326 = vmatpush2.bf16.msra.mxu0 0
        %327 = vmatprep.subr.bf16.mxu0 0
        %328 = vmatpush2.bf16.msra.mxu0 0
        %329 = vmatprep.subr.bf16.mxu0 0
        %330 = vmatpush2.bf16.msra.mxu0 0
        %331 = vmatprep.subr.bf16.mxu0 0
        %332 = vmatpush2.bf16.msra.mxu0 0
        %333 = vmatprep.subr.bf16.mxu0 0
        %334 = vmatpush2.bf16.msra.mxu0 0
        %335 = vmatprep.subr.bf16.mxu0 0
        %336 = vmatpush2.bf16.msra.mxu0 0
        %337 = vmatprep.subr.bf16.mxu0 0
        %338 = vmatpush2.bf16.msra.mxu0 0
        %339 = vmatprep.mubr.bf16.mxu0 0
        %340 = vmatmul.mubr.bf16.gmra.mxu0 %v284
        %v341 = vpop.f32.mrf.mxu0
        %v342 = vadd.f32 %v225, %v341
        %v343 = vpop.f32.mrf.mxu0
        %v344 = vadd.f32 %v229, %v343
        %v345 = vpop.f32.mrf.mxu0
        %v346 = vadd.f32 %v225, %v345
        %v347 = vpop.f32.mrf.mxu0
        %v348 = vadd.f32 %v229, %v347
        %349 = vmatprep.mubr.bf16.mxu0 0
        %350 = vmatmul.mubr.bf16.gmra.mxu0 %v287
        %v351 = vpop.f32.mrf.mxu0
        %v352 = vadd.f32 %v225, %v351
        %v353 = vpop.f32.mrf.mxu0
        %v354 = vadd.f32 %v229, %v353
        %v355 = vpop.f32.mrf.mxu0
        %v356 = vadd.f32 %v225, %v355
        %v357 = vpop.f32.mrf.mxu0
        %v358 = vadd.f32 %v229, %v357
        %359 = vmatprep.mubr.bf16.mxu0 0
        %360 = vmatmul.mubr.bf16.gmra.mxu0 %v290
        %v361 = vpop.f32.mrf.mxu0
        %v362 = vadd.f32 %v225, %v361
        %v363 = vpop.f32.mrf.mxu0
        %v364 = vadd.f32 %v229, %v363
        %v365 = vpop.f32.mrf.mxu0
        %v366 = vadd.f32 %v225, %v365
        %v367 = vpop.f32.mrf.mxu0
        %v368 = vadd.f32 %v229, %v367
        %369 = vmatprep.mubr.bf16.mxu0 0
        %370 = vmatmul.mubr.bf16.gmra.mxu0 %v293
        %v371 = vpop.f32.mrf.mxu0
        %v372 = vadd.f32 %v225, %v371
        %v373 = vpop.f32.mrf.mxu0
        %v374 = vadd.f32 %v229, %v373
        %v375 = vpop.f32.mrf.mxu0
        %v376 = vadd.f32 %v225, %v375
        %v377 = vpop.f32.mrf.mxu0
        %v378 = vadd.f32 %v229, %v377
        %379 = vmatprep.mubr.bf16.mxu0 0
        %380 = vmatmul.mubr.bf16.gmra.mxu0 %v296
        %v381 = vpop.f32.mrf.mxu0
        %v382 = vadd.f32 %v225, %v381
        %v383 = vpop.f32.mrf.mxu0
        %v384 = vadd.f32 %v229, %v383
        %v385 = vpop.f32.mrf.mxu0
        %v386 = vadd.f32 %v225, %v385
        %v387 = vpop.f32.mrf.mxu0
        %v388 = vadd.f32 %v229, %v387
        %389 = vmatprep.mubr.bf16.mxu0 0
        %390 = vmatmul.mubr.bf16.gmra.mxu0 %v299
        %v391 = vpop.f32.mrf.mxu0
        %v392 = vadd.f32 %v225, %v391
        %v393 = vpop.f32.mrf.mxu0
        %v394 = vadd.f32 %v229, %v393
        %v395 = vpop.f32.mrf.mxu0
        %v396 = vadd.f32 %v225, %v395
        %v397 = vpop.f32.mrf.mxu0
        %v398 = vadd.f32 %v229, %v397
        %399 = vmatprep.mubr.bf16.mxu0 0
        %400 = vmatmul.mubr.bf16.gmra.mxu0 %v302
        %v401 = vpop.f32.mrf.mxu0
        %v402 = vadd.f32 %v225, %v401
        %v403 = vpop.f32.mrf.mxu0
        %v404 = vadd.f32 %v229, %v403
        %v405 = vpop.f32.mrf.mxu0
        %v406 = vadd.f32 %v225, %v405
        %v407 = vpop.f32.mrf.mxu0
        %v408 = vadd.f32 %v229, %v407
        %409 = vmatprep.mubr.bf16.mxu0 0
        %410 = vmatmul.mubr.bf16.gmra.mxu0 %v305
        %v411 = vpop.f32.mrf.mxu0
        %v412 = vadd.f32 %v225, %v411
        %v413 = vpop.f32.mrf.mxu0
        %v414 = vadd.f32 %v229, %v413
        %v415 = vpop.f32.mrf.mxu0
        %v416 = vadd.f32 %v225, %v415
        %v417 = vpop.f32.mrf.mxu0
        %v418 = vadd.f32 %v229, %v417
        %419 = vdwg.mxu0
        %v420 = vmax.f32 %v342, 0.0
        %v421 = vmax.f32 %v344, 0.0
        %v422 = vmax.f32 %v346, 0.0
        %v423 = vmax.f32 %v348, 0.0
        %v424 = vmax.f32 %v352, 0.0
        %v425 = vmax.f32 %v354, 0.0
        %v426 = vmax.f32 %v356, 0.0
        %v427 = vmax.f32 %v358, 0.0
        %v428 = vmax.f32 %v362, 0.0
        %v429 = vmax.f32 %v364, 0.0
        %v430 = vmax.f32 %v366, 0.0
        %v431 = vmax.f32 %v368, 0.0
        %v432 = vmax.f32 %v372, 0.0
        %v433 = vmax.f32 %v374, 0.0
        %v434 = vmax.f32 %v376, 0.0
        %v435 = vmax.f32 %v378, 0.0
        %v436 = vmax.f32 %v382, 0.0
        %v437 = vmax.f32 %v384, 0.0
        %v438 = vmax.f32 %v386, 0.0
        %v439 = vmax.f32 %v388, 0.0
        %v440 = vmax.f32 %v392, 0.0
        %v441 = vmax.f32 %v394, 0.0
        %v442 = vmax.f32 %v396, 0.0
        %v443 = vmax.f32 %v398, 0.0
        %v444 = vmax.f32 %v402, 0.0
        %v445 = vmax.f32 %v404, 0.0
        %v446 = vmax.f32 %v406, 0.0
        %v447 = vmax.f32 %v408, 0.0
        %v448 = vmax.f32 %v412, 0.0
        %v449 = vmax.f32 %v414, 0.0
        %v450 = vmax.f32 %v416, 0.0
        %v451 = vmax.f32 %v418, 0.0
        %v452 = vpack.c.bf16 %v422, %v420
        %v453 = vpack.c.bf16 %v423, %v421
        %v454 = vpack.c.bf16 %v426, %v424
        %v455 = vpack.c.bf16 %v427, %v425
        %v456 = vpack.c.bf16 %v430, %v428
        %v457 = vpack.c.bf16 %v431, %v429
        %v458 = vpack.c.bf16 %v434, %v432
        %v459 = vpack.c.bf16 %v435, %v433
        %v460 = vpack.c.bf16 %v438, %v436
        %v461 = vpack.c.bf16 %v439, %v437
        %v462 = vpack.c.bf16 %v442, %v440
        %v463 = vpack.c.bf16 %v443, %v441
        %v464 = vpack.c.bf16 %v446, %v444
        %v465 = vpack.c.bf16 %v447, %v445
        %v466 = vpack.c.bf16 %v450, %v448
        %v467 = vpack.c.bf16 %v451, %v449
        %v484 = vunpack.c.l.b16 %v452
        %v485 = vunpack.c.l.b16 %v453
        %v486 = vunpack.c.h.b16 %v452
        %v487 = vunpack.c.h.b16 %v453
        %v488 = vunpack.c.l.b16 %v454
        %v489 = vunpack.c.l.b16 %v455
        %v490 = vunpack.c.h.b16 %v454
        %v491 = vunpack.c.h.b16 %v455
        %v492 = vunpack.c.l.b16 %v456
        %v493 = vunpack.c.l.b16 %v457
        %v494 = vunpack.c.h.b16 %v456
        %v495 = vunpack.c.h.b16 %v457
        %v496 = vunpack.c.l.b16 %v458
        %v497 = vunpack.c.l.b16 %v459
        %v498 = vunpack.c.h.b16 %v458
        %v499 = vunpack.c.h.b16 %v459
        %v500 = vunpack.c.l.b16 %v460
        %v501 = vunpack.c.l.b16 %v461
        %v502 = vunpack.c.h.b16 %v460
        %v503 = vunpack.c.h.b16 %v461
        %v504 = vunpack.c.l.b16 %v462
        %v505 = vunpack.c.l.b16 %v463
        %v506 = vunpack.c.h.b16 %v462
        %v507 = vunpack.c.h.b16 %v463
        %v508 = vunpack.c.l.b16 %v464
        %v509 = vunpack.c.l.b16 %v465
        %v510 = vunpack.c.h.b16 %v464
        %v511 = vunpack.c.h.b16 %v465
        %v512 = vunpack.c.l.b16 %v466
        %v513 = vunpack.c.l.b16 %v467
        %v514 = vunpack.c.h.b16 %v466
        %v515 = vunpack.c.h.b16 %v467
        %v516 = vpack.c.b16 %v485, %v484
        %v517 = vpack.c.b16 %v487, %v486
        %v518 = vpack.c.b16 %v489, %v488
        %v519 = vpack.c.b16 %v491, %v490
        %v520 = vpack.c.b16 %v493, %v492
        %v521 = vpack.c.b16 %v495, %v494
        %v522 = vpack.c.b16 %v497, %v496
        %v523 = vpack.c.b16 %v499, %v498
        %v524 = vpack.c.b16 %v501, %v500
        %v525 = vpack.c.b16 %v503, %v502
        %v526 = vpack.c.b16 %v505, %v504
        %v527 = vpack.c.b16 %v507, %v506
        %v528 = vpack.c.b16 %v509, %v508
        %v529 = vpack.c.b16 %v511, %v510
        %v530 = vpack.c.b16 %v513, %v512
        %v531 = vpack.c.b16 %v515, %v514
        %548 = vst [vmem:[%s188] sm:$0xff] %v516
        %549 = vst [vmem:[%s188 + $0x8] sm:$0xff] %v517
        %550 = vst [vmem:[%s188 + $0x10] sm:$0xff] %v518
        %551 = vst [vmem:[%s188 + $0x18] sm:$0xff] %v519
        %552 = vst [vmem:[%s188 + $0x20] sm:$0xff] %v520
        %553 = vst [vmem:[%s188 + $0x28] sm:$0xff] %v521
        %554 = vst [vmem:[%s188 + $0x30] sm:$0xff] %v522
        %555 = vst [vmem:[%s188 + $0x38] sm:$0xff] %v523
        %556 = vst [vmem:[%s188 + $0x40] sm:$0xff] %v524
        %557 = vst [vmem:[%s188 + $0x48] sm:$0xff] %v525
        %558 = vst [vmem:[%s188 + $0x50] sm:$0xff] %v526
        %559 = vst [vmem:[%s188 + $0x58] sm:$0xff] %v527
        %560 = vst [vmem:[%s188 + $0x60] sm:$0xff] %v528
        %561 = vst [vmem:[%s188 + $0x68] sm:$0xff] %v529
        %562 = vst [vmem:[%s188 + $0x70] sm:$0xff] %v530
        %563 = vst [vmem:[%s188 + $0x78] sm:$0xff] %v531
        %s564 = sand.u32 %s109, 1
        %s565 = scalar_lea.sflag [#allocation3], %s564
        %s566 = sand.u32 %s109, 1
        %s567 = smul.addr %s566, 128
        %s568 = scalar_lea.vmem [#allocation2], %s567
        // Predicated region
        $region33: #{tpu_custom_call.1} parent=31 // pred_check
          %p569 = pneg %p119
        $region34: #{tpu_custom_call.1} parent=31 // pred_check_branch
          %571 = sbr.rel (%p569) target = $region36
        $region35: #{tpu_custom_call.1} parent=31 // pred_region
          %s572 = smul.u32 16, %s22
          %s573 = smul.u32 2, %s21
          %s575 = ssub.s32 2048, 2048
          %576 = vsyncadd %s565, %s575
          %s577 = smul.addr %s572, 4
          %s578 = sadd.s32 %s573, %s577
          %s579 = smul.addr %s578, 64
          %s580 = scalar_lea.hbm %s3, %s579
          %s581 = sshll.u32 %s568, 4
          %s582 = int_to_ptr.vmem [resolvable:$true] %s581
          %587 = dma.vmem_to_hbm [thread:$0]  %s582, 2048, %s580, %s565, 128, 256, 8
        $region36: #{tpu_custom_call.1} parent=31 // pred_fallthru
          _
      $region32: #{tpu_custom_call.1} parent=5 // pred_fallthru
        _
      %p588 = scmp.le.s32.totalorder 2, %s12
      // Predicated region
      $region37: #{tpu_custom_call.1} parent=5 // pred_check
        %p589 = pneg %p588
      $region38: #{tpu_custom_call.1} parent=5 // pred_check_branch
        %591 = sbr.rel (%p589) target = $region40
      $region39: #{tpu_custom_call.1} parent=5 // pred_region
        %s592 = ssub.s32 %s12, 2
        // Predicated region
        $region41: #{tpu_custom_call.1} parent=39 // pred_check
          %p593 = pneg %p125
        $region42: #{tpu_custom_call.1} parent=39 // pred_check_branch
          %595 = sbr.rel (%p593) target = $region44
        $region43: #{tpu_custom_call.1} parent=39 // pred_region
          %s596 = sand.u32 %s110, 1
          %s597 = scalar_lea.sflag [#allocation3], %s596
          %s598 = sand.u32 %s110, 1
          %s599 = smul.addr %s598, 128
          %s600 = scalar_lea.vmem [#allocation2], %s599
          %601 = dma.done %s597, 2048
        $region44: #{tpu_custom_call.1} parent=39 // pred_fallthru
          _
      $region40: #{tpu_custom_call.1} parent=5 // pred_fallthru
        _
    $region6: #{tpu_custom_call.1} parent=1 // loop_footer
      %s16 = sadd.s32 1, %s12
    $region7: #{tpu_custom_call.1} parent=1 // loop_footer_branch
      %11 = sbr.rel target = $region3
    $region8: #{tpu_custom_call.1} parent=1 // loop_exit
      _
    %602 = vsyncpa [#allocation3], 1
    %s603 = scalar_lea.sflag [#allocation3], 1
    %604 = vsyncpa %s603, 1

</llo_original>
